<compile_context>
chip_gen: v5e
topology: v5e:2x2
jax: 0.10.0
libtpu: 0.0.40
codegen_flags: <defaults>
</compile_context>

<pallas_src>
import jax
import jax.numpy as jnp
from jax.experimental import pallas as pl
from jax.experimental.pallas import tpu as pltpu

BN_EPS = 1e-5


def fold_bn_into_conv(conv_w, gamma, beta, run_mean, run_var, eps=BN_EPS):
    """Fold eval-mode BatchNorm into the 1x1 conv; returns kernel-ready params.

    conv_w: (C_out, C_in) f32  (PyTorch 1x1 conv weight, OIHW with HW squeezed).

    Returns:
      w_kernel: (C_in, C_out) bf16 — transposed so the kernel matmul is
                (HW, C_in) @ (C_in, C_out) with C_out on the lane axis.
      b_kernel: (1, C_out)   f32  — folded bias, lane row.
    """
    scale = gamma * jax.lax.rsqrt(run_var + eps)          # (C_out,)
    w_folded = conv_w * scale[:, None]                    # (C_out, C_in) f32
    b_folded = beta - run_mean * scale                    # (C_out,)
    return (jnp.transpose(w_folded).astype(jnp.bfloat16),
            b_folded.reshape(1, -1).astype(jnp.float32))


def head_kernel(x_ref, w_ref, b_ref, o_ref):
    # x_ref: (Nb, HW, C_in)  bf16 — per-step batch block (NHWC-style)
    # w_ref: (C_in, C_out)   bf16 — BN-folded 1x1 conv weight (transposed)
    # b_ref: (1, C_out)      f32  — BN-folded bias, lane row
    # o_ref: (Nb, 1, C_out)  f32  — spatially averaged outputs, C_out lane-dense
    w = w_ref[...]
    b_row = b_ref[...]                      # hoisted: read once per grid step
    hw = x_ref.shape[1]
    inv_hw = jnp.float32(1.0 / hw)

    # Loop (not Python-unroll) over batch elements in this block: bounds the
    # (HW, C_out) f32 intermediate to one element's worth of live vregs.
    @pl.loop(0, x_ref.shape[0])
    def _(i):
        # 1x1 conv + folded BN: (HW, C_in) @ (C_in, C_out) on the MXU, f32 acc.
        y = jnp.dot(x_ref[i], w, preferred_element_type=jnp.float32) + b_row
        # SiLU / swish activation (EfficientNet default act_fn).
        y = y * jax.nn.sigmoid(y)
        # AdaptiveAvgPool2d((1,1)): sublane (XLU) reduce over HW -> (1, C_out),
        # already lane-dense for the output store.
        o_ref[i] = jnp.sum(y, axis=0, keepdims=True) * inv_hw


def _pick_block_n(n, c_in, hw, itemsize,
                  vmem_block_budget=2 * 1024 * 1024, min_steps=8):
    """Choose batch elements per grid step.

    Caps the per-step x block (double-buffered by the pipeline) at a VMEM budget
    that fits comfortably inside v5e's 16 MiB / v7x's 32 MiB scoped limits, and
    keeps >= min_steps grid steps when N allows so both v7x TensorCores get
    multiple steps of DMA/compute overlap.
    """
    by_vmem = max(1, vmem_block_budget // max(1, hw * c_in * itemsize))
    by_steps = max(1, n // min_steps)
    block_n = max(1, min(by_vmem, by_steps, n))
    while n % block_n:                      # keep the grid exact (no ragged block)
        block_n -= 1
    return block_n


def head_forward(x_nchw, w_kernel, b_kernel):
    """x_nchw: (N, C_in, H, W) f32.  w_kernel: (C_in, C_out) bf16.  b_kernel: (1, C_out) f32.

    Returns (N, C_out, 1, 1) f32, matching PyTorch Head.forward in eval mode.
    """
    N, C_in, H, W = x_nchw.shape
    C_out = w_kernel.shape[1]
    HW = H * W

    # Wrapper-side layout plumbing: cast the streamed tensor to bf16 (halves HBM
    # bytes for this bandwidth-bound kernel) and go NCHW -> (N, HW, C_in) so the
    # contraction dim is C_in and C_out lands on the lane axis in the kernel.
    x = x_nchw.astype(jnp.bfloat16).reshape(N, C_in, HW).transpose(0, 2, 1)

    block_n = _pick_block_n(N, C_in, HW, x.dtype.itemsize)
    grid = (N // block_n,)

    out = pl.pallas_call(
        head_kernel,
        out_shape=jax.ShapeDtypeStruct((N, 1, C_out), jnp.float32),
        grid_spec=pltpu.PrefetchScalarGridSpec(
            num_scalar_prefetch=0,
            grid=grid,
            in_specs=[
                pl.BlockSpec((block_n, HW, C_in), lambda n: (n, 0, 0)),
                pl.BlockSpec((C_in, C_out), lambda n: (0, 0)),
                pl.BlockSpec((1, C_out), lambda n: (0, 0)),
            ],
            out_specs=pl.BlockSpec((block_n, 1, C_out), lambda n: (n, 0, 0)),
        ),
        compiler_params=pltpu.CompilerParams(
            dimension_semantics=("parallel",),
            vmem_limit_bytes=32 * 1024 * 1024,
        ),
    )(x, w_kernel, b_kernel)

    # Match PyTorch AdaptiveAvgPool2d((1,1)) output layout: (N, C_out, 1, 1).
    return out.reshape(N, C_out, 1, 1)


if __name__ == "__main__":
    # Small shapes consistent with the module:
    #   in_channels  = blocks_args[-1]['output_filters']  -> 4
    #   out_channels = round_filters(feature_size)        -> 32
    N, C_in, H, W = 2, 4, 16, 16
    C_out = 32

    key = jax.random.PRNGKey(0)
    k_x, k_w, k_g, k_b, k_m, k_v = jax.random.split(key, 6)

    x = jax.random.normal(k_x, (N, C_in, H, W), dtype=jnp.float32)
    conv_w = jax.random.normal(k_w, (C_out, C_in), dtype=jnp.float32) * 0.1
    gamma = 1.0 + 0.1 * jax.random.normal(k_g, (C_out,), dtype=jnp.float32)
    beta = 0.1 * jax.random.normal(k_b, (C_out,), dtype=jnp.float32)
    run_mean = 0.1 * jax.random.normal(k_m, (C_out,), dtype=jnp.float32)
    run_var = jnp.abs(1.0 + 0.1 * jax.random.normal(k_v, (C_out,), dtype=jnp.float32))

    # BN fold + weight transpose + bf16 cast happen once, at parameter-prep time.
    w_kernel, b_kernel = fold_bn_into_conv(conv_w, gamma, beta, run_mean, run_var)

    out = head_forward(x, w_kernel, b_kernel)
    jax.block_until_ready(out)

    # Pure-JAX f32 reference with UNfused BN (validates both kernel and fold).
    yr = jnp.einsum("nchw,oc->nohw", x, conv_w)
    scale = gamma / jnp.sqrt(run_var + BN_EPS)
    yr = (yr - run_mean[None, :, None, None]) * scale[None, :, None, None] \
         + beta[None, :, None, None]
    yr = yr * jax.nn.sigmoid(yr)
    ref = jnp.mean(yr, axis=(2, 3)).reshape(N, C_out, 1, 1)

    # bf16 streaming inputs -> loosened tolerance vs the f32 reference.
    assert jnp.allclose(out, ref, atol=2e-2, rtol=2e-2), (
        float(jnp.max(jnp.abs(out - ref))))

    print("KERNEL_OK")
</pallas_src>

<mosaic_0001>
module attributes {stable_mosaic.version = 11 : i64} {
  func.func @head_kernel(%arg0: i32, %arg1: memref<1x256x4xbf16, #tpu.memory_space<vmem>>, %arg2: memref<4x32xbf16, #tpu.memory_space<vmem>>, %arg3: memref<1x32xf32, #tpu.memory_space<vmem>>, %arg4: memref<1x1x32xf32, #tpu.memory_space<vmem>>) attributes {dimension_semantics = [#tpu.dimension_semantics<parallel>], iteration_bounds = array<i64: 2>, scalar_prefetch = 0 : i64, scratch_operands = 0 : i64, tpu.core_type = #tpu.core_type<tc>, window_params = [{transform_indices = @transform_0, window_bounds = array<i64: 1, 256, 4>}, {pipeline_mode = #tpu.pipeline_mode<synchronous>, transform_indices = @transform_1, window_bounds = array<i64: 4, 32>}, {pipeline_mode = #tpu.pipeline_mode<synchronous>, transform_indices = @transform_2, window_bounds = array<i64: 1, 32>}, {transform_indices = @transform_3, window_bounds = array<i64: 1, 1, 32>}]} {
    %c0 = arith.constant 0 : index
    %c0_0 = arith.constant 0 : index
    %0 = vector.load %arg2[%c0, %c0_0] : memref<4x32xbf16, #tpu.memory_space<vmem>>, vector<4x32xbf16>
    %c0_1 = arith.constant 0 : index
    %c0_2 = arith.constant 0 : index
    %1 = vector.load %arg3[%c0_1, %c0_2] : memref<1x32xf32, #tpu.memory_space<vmem>>, vector<1x32xf32>
    %cst = arith.constant 3.906250e-03 : f32
    %c0_i32 = arith.constant 0 : i32
    %c1_i32 = arith.constant 1 : i32
    %2 = arith.muli %c0_i32, %c1_i32 : i32
    %c0_i32_3 = arith.constant 0 : i32
    %3 = arith.addi %c0_i32_3, %2 : i32
    %4 = arith.index_cast %3 : i32 to index
    %c0_4 = arith.constant 0 : index
    %c0_5 = arith.constant 0 : index
    %5 = vector.load %arg1[%4, %c0_4, %c0_5] : memref<1x256x4xbf16, #tpu.memory_space<vmem>>, vector<1x256x4xbf16>
    %6 = vector.shape_cast %5 : vector<1x256x4xbf16> to vector<256x4xbf16>
    %cst_6 = arith.constant dense<0.000000e+00> : vector<256x32xf32>
    %7 = tpu.matmul %6, %0, %cst_6 {dimension_numbers = #tpu.dot_dimension_numbers<[1], [0], [0], [1], [0, 0, 1, 1], [], []>} : vector<256x4xbf16>, vector<4x32xbf16>, vector<256x32xf32> -> vector<256x32xf32>
    %8 = vector.broadcast %1 : vector<1x32xf32> to vector<256x32xf32>
    %9 = arith.addf %7, %8 : vector<256x32xf32>
    %10 = arith.negf %9 : vector<256x32xf32>
    %11 = math.exp %10 : vector<256x32xf32>
    %cst_7 = arith.constant 1.000000e+00 : f32
    %12 = vector.broadcast %cst_7 : f32 to vector<256x32xf32>
    %13 = arith.addf %12, %11 : vector<256x32xf32>
    %14 = arith.divf %12, %13 : vector<256x32xf32>
    %15 = arith.mulf %9, %14 : vector<256x32xf32>
    %cst_8 = arith.constant dense<0.000000e+00> : vector<32xf32>
    %16 = vector.multi_reduction <add>, %15, %cst_8 [0] : vector<256x32xf32> to vector<32xf32>
    %17 = vector.shape_cast %16 : vector<32xf32> to vector<1x32xf32>
    %18 = vector.broadcast %cst : f32 to vector<1x32xf32>
    %19 = arith.mulf %17, %18 : vector<1x32xf32>
    %20 = arith.index_cast %3 : i32 to index
    %c0_9 = arith.constant 0 : index
    %c0_10 = arith.constant 0 : index
    %21 = vector.load %arg4[%20, %c0_9, %c0_10] : memref<1x1x32xf32, #tpu.memory_space<vmem>>, vector<1x1x32xf32>
    %22 = vector.shape_cast %21 : vector<1x1x32xf32> to vector<1x32xf32>
    %23 = vector.shape_cast %19 : vector<1x32xf32> to vector<1x1x32xf32>
    tpu.vector_store %arg4[%20, %c0_9, %c0_10], %23 {strides = array<i32>} : memref<1x1x32xf32, #tpu.memory_space<vmem>>, vector<1x1x32xf32>,
    %c1_i32_11 = arith.constant 1 : i32
    return
  }
  func.func @transform_0(%arg0: i32) -> (i32, i32, i32) {
    %c0_i32 = arith.constant 0 : i32
    %c0_i32_0 = arith.constant 0 : i32
    %c0_i32_1 = arith.constant 0 : i32
    return %arg0, %c0_i32, %c0_i32_0 : i32, i32, i32
  }
  func.func @transform_1(%arg0: i32) -> (i32, i32) {
    %c0_i32 = arith.constant 0 : i32
    %c0_i32_0 = arith.constant 0 : i32
    %c0_i32_1 = arith.constant 0 : i32
    return %c0_i32, %c0_i32_0 : i32, i32
  }
  func.func @transform_2(%arg0: i32) -> (i32, i32) {
    %c0_i32 = arith.constant 0 : i32
    %c0_i32_0 = arith.constant 0 : i32
    %c0_i32_1 = arith.constant 0 : i32
    return %c0_i32, %c0_i32_0 : i32, i32
  }
  func.func @transform_3(%arg0: i32) -> (i32, i32, i32) {
    %c0_i32 = arith.constant 0 : i32
    %c0_i32_0 = arith.constant 0 : i32
    %c0_i32_1 = arith.constant 0 : i32
    return %arg0, %c0_i32, %c0_i32_0 : i32, i32, i32
  }
}

</mosaic_0001>

<llo_original>
// kernel: tpu_custom_call.1
$region0: #{tpu_custom_call.1}
  #allocation0 [shape = 'u32[]', space=smem, size = 0x4, offset = 0x4, fixed_abs, tag = 'smem constant byte address 0x4 - core index']
  #allocation1 [shape = 'u32[72,128]{1,0:T(1,128)}', space=vmem, size = 0x9000, scoped, tag = 'internal scratch']
  %s0 = inlined_call_operand.vmem [shape: bf16[2,256,4], index: 0, kind: input, shape index: {}]
  %s1 = inlined_call_operand.vmem [shape: bf16[4,32], index: 1, kind: input, shape index: {}]
  %s2 = inlined_call_operand.vmem [shape: f32[1,32], index: 2, kind: input, shape index: {}]
  %s3 = inlined_call_operand.hbm [shape: f32[2,1,32], index: 3, kind: output, shape index: {}]
  %s4 = sld [smem:[#allocation0]]
  $region45: #{tpu_custom_call.1} parent=0
    _
  %s6 = ssub.s32 1, %s4
  %s7 = scalar_select 0, %s6, %s4
  $region1: #{tpu_custom_call.1} parent=0
    #allocation2 [shape = 'u8[1024]{0}', space=vmem, size = 0x400, scoped, tag = 'output window, operand 0']
    #allocation3 [shape = 's32[2]{0}', space=sflag, size = 0x8, scoped, tag = 'scoped memory for tpu_custom_call.1']
    %8 = vsyncpa [#allocation3], 0
    %s9 = scalar_lea.sflag [#allocation3], 1
    %10 = vsyncpa %s9, 0
    loop: start=0, step=1, limit=4
    $region2: #{tpu_custom_call.1} parent=1 // loop_pre_header
      _
    $region3: #{tpu_custom_call.1} parent=1 // loop_header
      %s12 = sphi 0, %s16
      %p13 = scmp.ge.s32.totalorder %s12, 4
      %s22 = sphi 0, %s24
      %s25 = sphi 0, %s22
      %s26 = sphi 0, %s25
      %s42 = sphi 0, %s26
      %s46 = sphi 0, %s46
      %s48 = sphi 0, %s46
      %s49 = sphi 0, %s48
      %s63 = sphi 0, %s49
      %s67 = sphi 0, %s67
      %s69 = sphi 0, %s67
      %s70 = sphi 0, %s69
      %s84 = sphi 0, %s70
      %s90 = sphi 0, %s92
      %s93 = sphi 0, %s90
      %s94 = sphi 0, %s93
      %s110 = sphi 0, %s94
    $region4: #{tpu_custom_call.1} parent=1 // loop_header_branch
      %15 = sbr.rel (%p13) target = $region8
    $region5: #{tpu_custom_call.1} parent=1 // loop_body
      %s17 = ssub.s32 %s12, 1
      %s18 = ssub.s32 %s12, 2
      %s19 = sadd.s32 %s12, 1
      %s20 = ssub.s32 %s12, %s19
      %p21 = scmp.eq.s32.totalorder %s20, 0
      %s23 = sadd.s32 %s22, 1
      %s24 = scalar_select %p21, %s22, %s23
      %p27 = pneg %p21
      %p28 = scmp.eq.s32.totalorder %s12, 1
      %p29 = por %p27, %p28
      %p30 = scmp.ne.s32.totalorder %s22, %s25
      %p31 = scmp.eq.s32.totalorder %s12, 0
      %p32 = por %p30, %p31
      %p33 = scmp.ne.s32.totalorder %s22, %s25
      %p34 = scmp.eq.s32.totalorder %s17, 1
      %p35 = por %p33, %p34
      %p36 = scmp.ne.s32.totalorder %s25, %s26
      %p37 = scmp.eq.s32.totalorder %s17, 0
      %p38 = por %p36, %p37
      %p39 = scmp.ne.s32.totalorder %s25, %s26
      %p40 = scmp.eq.s32.totalorder %s18, 1
      %p41 = por %p39, %p40
      %p43 = scmp.ne.s32.totalorder %s26, %s42
      %p44 = scmp.eq.s32.totalorder %s18, 0
      %p45 = por %p43, %p44
      %s47 = sadd.s32 %s46, 1
      %p50 = scmp.eq.s32.totalorder %s12, 1
      %p51 = scmp.ne.s32.totalorder %s46, %s48
      %p52 = scmp.eq.s32.totalorder %s12, 0
      %p53 = por %p51, %p52
      %p54 = scmp.ne.s32.totalorder %s46, %s48
      %p55 = scmp.eq.s32.totalorder %s17, 1
      %p56 = por %p54, %p55
      %p57 = scmp.ne.s32.totalorder %s48, %s49
      %p58 = scmp.eq.s32.totalorder %s17, 0
      %p59 = por %p57, %p58
      %p60 = scmp.ne.s32.totalorder %s48, %s49
      %p61 = scmp.eq.s32.totalorder %s18, 1
      %p62 = por %p60, %p61
      %p64 = scmp.ne.s32.totalorder %s49, %s63
      %p65 = scmp.eq.s32.totalorder %s18, 0
      %p66 = por %p64, %p65
      %s68 = sadd.s32 %s67, 1
      %p71 = scmp.eq.s32.totalorder %s12, 1
      %p72 = scmp.ne.s32.totalorder %s67, %s69
      %p73 = scmp.eq.s32.totalorder %s12, 0
      %p74 = por %p72, %p73
      %p75 = scmp.ne.s32.totalorder %s67, %s69
      %p76 = scmp.eq.s32.totalorder %s17, 1
      %p77 = por %p75, %p76
      %p78 = scmp.ne.s32.totalorder %s69, %s70
      %p79 = scmp.eq.s32.totalorder %s17, 0
      %p80 = por %p78, %p79
      %p81 = scmp.ne.s32.totalorder %s69, %s70
      %p82 = scmp.eq.s32.totalorder %s18, 1
      %p83 = por %p81, %p82
      %p85 = scmp.ne.s32.totalorder %s70, %s84
      %p86 = scmp.eq.s32.totalorder %s18, 0
      %p87 = por %p85, %p86
      %s88 = ssub.s32 %s12, %s19
      %p89 = scmp.eq.s32.totalorder %s88, 0
      %s91 = sadd.s32 %s90, 1
      %s92 = scalar_select %p89, %s90, %s91
      %p95 = pneg %p89
      %p96 = scmp.eq.s32.totalorder %s12, 1
      %p97 = por %p95, %p96
      %p98 = scmp.ne.s32.totalorder %s90, %s93
      %p99 = scmp.eq.s32.totalorder %s12, 0
      %p100 = por %p98, %p99
      %p101 = scmp.ne.s32.totalorder %s90, %s93
      %p102 = scmp.eq.s32.totalorder %s17, 1
      %p103 = por %p101, %p102
      %p104 = scmp.ne.s32.totalorder %s93, %s94
      %p105 = scmp.eq.s32.totalorder %s17, 0
      %p106 = por %p104, %p105
      %p107 = scmp.ne.s32.totalorder %s93, %s94
      %p108 = scmp.eq.s32.totalorder %s18, 1
      %p109 = por %p107, %p108
      %p111 = scmp.ne.s32.totalorder %s94, %s110
      %p112 = scmp.eq.s32.totalorder %s18, 0
      %p113 = por %p111, %p112
      %p114 = scmp.le.s32.totalorder 1, %s12
      %p115 = scmp.lt.s32.totalorder %s12, 3
      %p116 = pnand %p114, %p115
      %p117 = pneg %p116
      // Predicated region
      $region9: #{tpu_custom_call.1} parent=5 // pred_check
        _
      $region10: #{tpu_custom_call.1} parent=5 // pred_check_branch
        %119 = sbr.rel (%p116) target = $region12
      $region11: #{tpu_custom_call.1} parent=5 // pred_region
        %s120 = ssub.s32 %s12, 1
        // Predicated region
        $region13: #{tpu_custom_call.1} parent=11 // pred_check
          %p121 = pneg %p59
        $region14: #{tpu_custom_call.1} parent=11 // pred_check_branch
          %123 = sbr.rel (%p121) target = $region16
        $region15: #{tpu_custom_call.1} parent=11 // pred_region
          _
        $region16: #{tpu_custom_call.1} parent=11 // pred_fallthru
          _
        // Predicated region
        $region17: #{tpu_custom_call.1} parent=11 // pred_check
          %p124 = pneg %p80
        $region18: #{tpu_custom_call.1} parent=11 // pred_check_branch
          %126 = sbr.rel (%p124) target = $region20
        $region19: #{tpu_custom_call.1} parent=11 // pred_region
          _
        $region20: #{tpu_custom_call.1} parent=11 // pred_fallthru
          _
      $region12: #{tpu_custom_call.1} parent=5 // pred_fallthru
        _
      %p127 = scmp.lt.s32.totalorder %s12, 2
      // Predicated region
      $region21: #{tpu_custom_call.1} parent=5 // pred_check
        %p128 = pneg %p127
      $region22: #{tpu_custom_call.1} parent=5 // pred_check_branch
        %130 = sbr.rel (%p128) target = $region24
      $region23: #{tpu_custom_call.1} parent=5 // pred_region
        // Predicated region
        $region25: #{tpu_custom_call.1} parent=23 // pred_check
          %p131 = pneg %p32
        $region26: #{tpu_custom_call.1} parent=23 // pred_check_branch
          %133 = sbr.rel (%p131) target = $region28
        $region27: #{tpu_custom_call.1} parent=23 // pred_region
          %p134 = scmp.lt.s32.totalorder %s12, 1
          %s135 = scalar_select %p134, %s12, 1
          %s136 = smul.addr %s135, 32
          %s137 = smul.addr %s136, 4
          %s138 = scalar_lea.vmem %s0, %s137
        $region28: #{tpu_custom_call.1} parent=23 // pred_fallthru
          _
      $region24: #{tpu_custom_call.1} parent=5 // pred_fallthru
        _
      %p139 = scmp.le.s32.totalorder 1, %s12
      %p140 = scmp.lt.s32.totalorder %s12, 3
      %p141 = pnand %p139, %p140
      %p142 = pneg %p141
      // Predicated region
      $region29: #{tpu_custom_call.1} parent=5 // pred_check
        _
      $region30: #{tpu_custom_call.1} parent=5 // pred_check_branch
        %144 = sbr.rel (%p141) target = $region32
      $region31: #{tpu_custom_call.1} parent=5 // pred_region
        %s145 = ssub.s32 %s12, 1
        %p146 = scmp.lt.s32.totalorder %s17, 1
        %s147 = scalar_select %p146, %s17, 1
        %s148 = smul.addr %s147, 32
        %s149 = smul.addr %s148, 4
        %s150 = scalar_lea.vmem %s0, %s149
        %p151 = pneg %p38
        %p152 = pneg %p35
        %p153 = pneg %p59
        %p154 = pneg %p56
        %p155 = pneg %p80
        %p156 = pneg %p77
        %p157 = pneg %p106
        %p158 = pneg %p103
        %s159 = sand.u32 %s93, 1
        %s160 = scalar_lea.sflag [#allocation3], %s159
        %s161 = sand.u32 %s93, 1
        %s162 = scalar_lea.vmem [#allocation2], %s161
        %p163 = scmp.lt.s32.totalorder %s17, 1
        %s164 = scalar_select %p163, %s17, 1
        %s165 = smul.addr %s164, 32
        %s166 = smul.addr %s165, 4
        %s167 = scalar_lea.vmem %s0, %s166
        %v169 = vld [vmem:[%s1] sm:$0x3]
        %v170 = vld [vmem:[%s2] sm:$0x1]
        %v171 = vld [vmem:[%s167] sm:$0xf]
        %v172 = vld [vmem:[%s167 + $0x4] sm:$0xf]
        %v173 = vld [vmem:[%s167 + $0x8] sm:$0xf]
        %v174 = vld [vmem:[%s167 + $0xc] sm:$0xf]
        %v175 = vld [vmem:[%s167 + $0x10] sm:$0xf]
        %v176 = vld [vmem:[%s167 + $0x14] sm:$0xf]
        %v177 = vld [vmem:[%s167 + $0x18] sm:$0xf]
        %v178 = vld [vmem:[%s167 + $0x1c] sm:$0xf]
        %v179 = vld [vmem:[%s167 + $0x20] sm:$0xf]
        %v180 = vld [vmem:[%s167 + $0x24] sm:$0xf]
        %v181 = vld [vmem:[%s167 + $0x28] sm:$0xf]
        %v182 = vld [vmem:[%s167 + $0x2c] sm:$0xf]
        %v183 = vld [vmem:[%s167 + $0x30] sm:$0xf]
        %v184 = vld [vmem:[%s167 + $0x34] sm:$0xf]
        %v185 = vld [vmem:[%s167 + $0x38] sm:$0xf]
        %v186 = vld [vmem:[%s167 + $0x3c] sm:$0xf]
        %v187 = vld [vmem:[%s167 + $0x40] sm:$0xf]
        %v188 = vld [vmem:[%s167 + $0x44] sm:$0xf]
        %v189 = vld [vmem:[%s167 + $0x48] sm:$0xf]
        %v190 = vld [vmem:[%s167 + $0x4c] sm:$0xf]
        %v191 = vld [vmem:[%s167 + $0x50] sm:$0xf]
        %v192 = vld [vmem:[%s167 + $0x54] sm:$0xf]
        %v193 = vld [vmem:[%s167 + $0x58] sm:$0xf]
        %v194 = vld [vmem:[%s167 + $0x5c] sm:$0xf]
        %v195 = vld [vmem:[%s167 + $0x60] sm:$0xf]
        %v196 = vld [vmem:[%s167 + $0x64] sm:$0xf]
        %v197 = vld [vmem:[%s167 + $0x68] sm:$0xf]
        %v198 = vld [vmem:[%s167 + $0x6c] sm:$0xf]
        %v199 = vld [vmem:[%s167 + $0x70] sm:$0xf]
        %v200 = vld [vmem:[%s167 + $0x74] sm:$0xf]
        %v201 = vld [vmem:[%s167 + $0x78] sm:$0xf]
        %v202 = vld [vmem:[%s167 + $0x7c] sm:$0xf]
        %v204 = vperm.slane %v170, 0
        %v238 = vunpack.c.l.b16 %v171
        %v239 = vunpack.c.l.b16 %v172
        %v240 = vunpack.c.l.b16 %v173
        %v241 = vunpack.c.l.b16 %v174
        %v242 = vunpack.c.l.b16 %v175
        %v243 = vunpack.c.l.b16 %v176
        %v244 = vunpack.c.l.b16 %v177
        %v245 = vunpack.c.l.b16 %v178
        %v246 = vunpack.c.l.b16 %v179
        %v247 = vunpack.c.l.b16 %v180
        %v248 = vunpack.c.l.b16 %v181
        %v249 = vunpack.c.l.b16 %v182
        %v250 = vunpack.c.l.b16 %v183
        %v251 = vunpack.c.l.b16 %v184
        %v252 = vunpack.c.l.b16 %v185
        %v253 = vunpack.c.l.b16 %v186
        %v254 = vunpack.c.l.b16 %v187
        %v255 = vunpack.c.l.b16 %v188
        %v256 = vunpack.c.l.b16 %v189
        %v257 = vunpack.c.l.b16 %v190
        %v258 = vunpack.c.l.b16 %v191
        %v259 = vunpack.c.l.b16 %v192
        %v260 = vunpack.c.l.b16 %v193
        %v261 = vunpack.c.l.b16 %v194
        %v262 = vunpack.c.l.b16 %v195
        %v263 = vunpack.c.l.b16 %v196
        %v264 = vunpack.c.l.b16 %v197
        %v265 = vunpack.c.l.b16 %v198
        %v266 = vunpack.c.l.b16 %v199
        %v267 = vunpack.c.l.b16 %v200
        %v268 = vunpack.c.l.b16 %v201
        %v269 = vunpack.c.l.b16 %v202
        %v270 = vpack.c.b16 %v239, %v238
        %v271 = vpack.c.b16 %v241, %v240
        %v272 = vpack.c.b16 %v243, %v242
        %v273 = vpack.c.b16 %v245, %v244
        %v274 = vpack.c.b16 %v247, %v246
        %v275 = vpack.c.b16 %v249, %v248
        %v276 = vpack.c.b16 %v251, %v250
        %v277 = vpack.c.b16 %v253, %v252
        %v278 = vpack.c.b16 %v255, %v254
        %v279 = vpack.c.b16 %v257, %v256
        %v280 = vpack.c.b16 %v259, %v258
        %v281 = vpack.c.b16 %v261, %v260
        %v282 = vpack.c.b16 %v263, %v262
        %v283 = vpack.c.b16 %v265, %v264
        %v284 = vpack.c.b16 %v267, %v266
        %v285 = vpack.c.b16 %v269, %v268
        %vm286 = vcmask 31744
        %v288 = vsel %vm286, %v270, 0
        %v291 = vsel %vm286, %v271, 0
        %v294 = vsel %vm286, %v272, 0
        %v297 = vsel %vm286, %v273, 0
        %v300 = vsel %vm286, %v274, 0
        %v303 = vsel %vm286, %v275, 0
        %v306 = vsel %vm286, %v276, 0
        %v309 = vsel %vm286, %v277, 0
        %v312 = vsel %vm286, %v278, 0
        %v315 = vsel %vm286, %v279, 0
        %v318 = vsel %vm286, %v280, 0
        %v321 = vsel %vm286, %v281, 0
        %v324 = vsel %vm286, %v282, 0
        %v327 = vsel %vm286, %v283, 0
        %v330 = vsel %vm286, %v284, 0
        %v333 = vsel %vm286, %v285, 0
        %vm335 = vcmask 1041408
        %v337 = vsel %vm335, %v169, 0
        %339 = vmatpush.bf16.msra.mxu0 0
        %340 = vmatpush.bf16.msra.mxu0 0
        %341 = vmatpush.bf16.msra.mxu0 0
        %342 = vmatpush.bf16.msra.mxu0 0
        %343 = vmatpush.bf16.msra.mxu0 0
        %344 = vmatpush.bf16.msra.mxu0 0
        %345 = vmatpush.bf16.msra.mxu0 0
        %346 = vmatpush.bf16.msra.mxu0 %v337
        %347 = vmatmul.bf16.gmra.mxu0 %v288
        %v348 = vpop.f32.mrf.mxu0
        %v349 = vadd.f32 %v204, %v348
        %v350 = vpop.f32.mrf.mxu0
        %v351 = vadd.f32 %v204, %v350
        %352 = vmatmul.bf16.gmra.mxu0 %v291
        %v353 = vpop.f32.mrf.mxu0
        %v354 = vadd.f32 %v204, %v353
        %v355 = vpop.f32.mrf.mxu0
        %v356 = vadd.f32 %v204, %v355
        %357 = vmatmul.bf16.gmra.mxu0 %v294
        %v358 = vpop.f32.mrf.mxu0
        %v359 = vadd.f32 %v204, %v358
        %v360 = vpop.f32.mrf.mxu0
        %v361 = vadd.f32 %v204, %v360
        %362 = vmatmul.bf16.gmra.mxu0 %v297
        %v363 = vpop.f32.mrf.mxu0
        %v364 = vadd.f32 %v204, %v363
        %v365 = vpop.f32.mrf.mxu0
        %v366 = vadd.f32 %v204, %v365
        %367 = vmatmul.bf16.gmra.mxu0 %v300
        %v368 = vpop.f32.mrf.mxu0
        %v369 = vadd.f32 %v204, %v368
        %v370 = vpop.f32.mrf.mxu0
        %v371 = vadd.f32 %v204, %v370
        %372 = vmatmul.bf16.gmra.mxu0 %v303
        %v373 = vpop.f32.mrf.mxu0
        %v374 = vadd.f32 %v204, %v373
        %v375 = vpop.f32.mrf.mxu0
        %v376 = vadd.f32 %v204, %v375
        %377 = vmatmul.bf16.gmra.mxu0 %v306
        %v378 = vpop.f32.mrf.mxu0
        %v379 = vadd.f32 %v204, %v378
        %v380 = vpop.f32.mrf.mxu0
        %v381 = vadd.f32 %v204, %v380
        %382 = vmatmul.bf16.gmra.mxu0 %v309
        %v383 = vpop.f32.mrf.mxu0
        %v384 = vadd.f32 %v204, %v383
        %v385 = vpop.f32.mrf.mxu0
        %v386 = vadd.f32 %v204, %v385
        %387 = vmatmul.bf16.gmra.mxu0 %v312
        %v388 = vpop.f32.mrf.mxu0
        %v389 = vadd.f32 %v204, %v388
        %v390 = vpop.f32.mrf.mxu0
        %v391 = vadd.f32 %v204, %v390
        %392 = vmatmul.bf16.gmra.mxu0 %v315
        %v393 = vpop.f32.mrf.mxu0
        %v394 = vadd.f32 %v204, %v393
        %v395 = vpop.f32.mrf.mxu0
        %v396 = vadd.f32 %v204, %v395
        %397 = vmatmul.bf16.gmra.mxu0 %v318
        %v398 = vpop.f32.mrf.mxu0
        %v399 = vadd.f32 %v204, %v398
        %v400 = vpop.f32.mrf.mxu0
        %v401 = vadd.f32 %v204, %v400
        %402 = vmatmul.bf16.gmra.mxu0 %v321
        %v403 = vpop.f32.mrf.mxu0
        %v404 = vadd.f32 %v204, %v403
        %v405 = vpop.f32.mrf.mxu0
        %v406 = vadd.f32 %v204, %v405
        %407 = vmatmul.bf16.gmra.mxu0 %v324
        %v408 = vpop.f32.mrf.mxu0
        %v409 = vadd.f32 %v204, %v408
        %v410 = vpop.f32.mrf.mxu0
        %v411 = vadd.f32 %v204, %v410
        %412 = vmatmul.bf16.gmra.mxu0 %v327
        %v413 = vpop.f32.mrf.mxu0
        %v414 = vadd.f32 %v204, %v413
        %v415 = vpop.f32.mrf.mxu0
        %v416 = vadd.f32 %v204, %v415
        %417 = vmatmul.bf16.gmra.mxu0 %v330
        %v418 = vpop.f32.mrf.mxu0
        %v419 = vadd.f32 %v204, %v418
        %v420 = vpop.f32.mrf.mxu0
        %v421 = vadd.f32 %v204, %v420
        %422 = vmatmul.bf16.gmra.mxu0 %v333
        %v423 = vpop.f32.mrf.mxu0
        %v424 = vadd.f32 %v204, %v423
        %v425 = vpop.f32.mrf.mxu0
        %v426 = vadd.f32 %v204, %v425
        %427 = vdwg.mxu0
        %v428 = vxor.u32 %v349, 2147483648
        %v429 = vxor.u32 %v351, 2147483648
        %v430 = vxor.u32 %v354, 2147483648
        %v431 = vxor.u32 %v356, 2147483648
        %v432 = vxor.u32 %v359, 2147483648
        %v433 = vxor.u32 %v361, 2147483648
        %v434 = vxor.u32 %v364, 2147483648
        %v435 = vxor.u32 %v366, 2147483648
        %v436 = vxor.u32 %v369, 2147483648
        %v437 = vxor.u32 %v371, 2147483648
        %v438 = vxor.u32 %v374, 2147483648
        %v439 = vxor.u32 %v376, 2147483648
        %v440 = vxor.u32 %v379, 2147483648
        %v441 = vxor.u32 %v381, 2147483648
        %v442 = vxor.u32 %v384, 2147483648
        %v443 = vxor.u32 %v386, 2147483648
        %v444 = vxor.u32 %v389, 2147483648
        %v445 = vxor.u32 %v391, 2147483648
        %v446 = vxor.u32 %v394, 2147483648
        %v447 = vxor.u32 %v396, 2147483648
        %v448 = vxor.u32 %v399, 2147483648
        %v449 = vxor.u32 %v401, 2147483648
        %v450 = vxor.u32 %v404, 2147483648
        %v451 = vxor.u32 %v406, 2147483648
        %v452 = vxor.u32 %v409, 2147483648
        %v453 = vxor.u32 %v411, 2147483648
        %v454 = vxor.u32 %v414, 2147483648
        %v455 = vxor.u32 %v416, 2147483648
        %v456 = vxor.u32 %v419, 2147483648
        %v457 = vxor.u32 %v421, 2147483648
        %v458 = vxor.u32 %v424, 2147483648
        %v459 = vxor.u32 %v426, 2147483648
        %v460 = vmul.f32 %v428, 1.442695
        %v461 = vpow.pop %v460
        %v462 = vmul.f32 %v429, 1.442695
        %v463 = vpow.pop %v462
        %v464 = vmul.f32 %v430, 1.442695
        %v465 = vpow.pop %v464
        %v466 = vmul.f32 %v431, 1.442695
        %v467 = vpow.pop %v466
        %v468 = vmul.f32 %v432, 1.442695
        %v469 = vpow.pop %v468
        %v470 = vmul.f32 %v433, 1.442695
        %v471 = vpow.pop %v470
        %v472 = vmul.f32 %v434, 1.442695
        %v473 = vpow.pop %v472
        %v474 = vmul.f32 %v435, 1.442695
        %v475 = vpow.pop %v474
        %v476 = vmul.f32 %v436, 1.442695
        %v477 = vpow.pop %v476
        %v478 = vmul.f32 %v437, 1.442695
        %v479 = vpow.pop %v478
        %v480 = vmul.f32 %v438, 1.442695
        %v481 = vpow.pop %v480
        %v482 = vmul.f32 %v439, 1.442695
        %v483 = vpow.pop %v482
        %v484 = vmul.f32 %v440, 1.442695
        %v485 = vpow.pop %v484
        %v486 = vmul.f32 %v441, 1.442695
        %v487 = vpow.pop %v486
        %v488 = vmul.f32 %v442, 1.442695
        %v489 = vpow.pop %v488
        %v490 = vmul.f32 %v443, 1.442695
        %v491 = vpow.pop %v490
        %v492 = vmul.f32 %v444, 1.442695
        %v493 = vpow.pop %v492
        %v494 = vmul.f32 %v445, 1.442695
        %v495 = vpow.pop %v494
        %v496 = vmul.f32 %v446, 1.442695
        %v497 = vpow.pop %v496
        %v498 = vmul.f32 %v447, 1.442695
        %v499 = vpow.pop %v498
        %v500 = vmul.f32 %v448, 1.442695
        %v501 = vpow.pop %v500
        %v502 = vmul.f32 %v449, 1.442695
        %v503 = vpow.pop %v502
        %v504 = vmul.f32 %v450, 1.442695
        %v505 = vpow.pop %v504
        %v506 = vmul.f32 %v451, 1.442695
        %v507 = vpow.pop %v506
        %v508 = vmul.f32 %v452, 1.442695
        %v509 = vpow.pop %v508
        %v510 = vmul.f32 %v453, 1.442695
        %v511 = vpow.pop %v510
        %v512 = vmul.f32 %v454, 1.442695
        %v513 = vpow.pop %v512
        %v514 = vmul.f32 %v455, 1.442695
        %v515 = vpow.pop %v514
        %v516 = vmul.f32 %v456, 1.442695
        %v517 = vpow.pop %v516
        %v518 = vmul.f32 %v457, 1.442695
        %v519 = vpow.pop %v518
        %v520 = vmul.f32 %v458, 1.442695
        %v521 = vpow.pop %v520
        %v522 = vmul.f32 %v459, 1.442695
        %v523 = vpow.pop %v522
        %v524 = vadd.f32 %v461, 1.0
        %v525 = vadd.f32 %v463, 1.0
        %v526 = vadd.f32 %v465, 1.0
        %v527 = vadd.f32 %v467, 1.0
        %v528 = vadd.f32 %v469, 1.0
        %v529 = vadd.f32 %v471, 1.0
        %v530 = vadd.f32 %v473, 1.0
        %v531 = vadd.f32 %v475, 1.0
        %v532 = vadd.f32 %v477, 1.0
        %v533 = vadd.f32 %v479, 1.0
        %v534 = vadd.f32 %v481, 1.0
        %v535 = vadd.f32 %v483, 1.0
        %v536 = vadd.f32 %v485, 1.0
        %v537 = vadd.f32 %v487, 1.0
        %v538 = vadd.f32 %v489, 1.0
        %v539 = vadd.f32 %v491, 1.0
        %v540 = vadd.f32 %v493, 1.0
        %v541 = vadd.f32 %v495, 1.0
        %v542 = vadd.f32 %v497, 1.0
        %v543 = vadd.f32 %v499, 1.0
        %v544 = vadd.f32 %v501, 1.0
        %v545 = vadd.f32 %v503, 1.0
        %v546 = vadd.f32 %v505, 1.0
        %v547 = vadd.f32 %v507, 1.0
        %v548 = vadd.f32 %v509, 1.0
        %v549 = vadd.f32 %v511, 1.0
        %v550 = vadd.f32 %v513, 1.0
        %v551 = vadd.f32 %v515, 1.0
        %v552 = vadd.f32 %v517, 1.0
        %v553 = vadd.f32 %v519, 1.0
        %v554 = vadd.f32 %v521, 1.0
        %v555 = vadd.f32 %v523, 1.0
        %v556 = vrcp.pop %v524
        %v557 = vmul.f32 %v524, %v556
        %v558 = vsub.f32 1.0, %v557
        %v559 = vmul.f32 %v556, %v558
        %v560 = vadd.f32 %v556, %v559
        %vm561 = vweird.f32 %v524
        %vm562 = vweird.f32 %v556
        %vm563 = vmor %vm561, %vm562
        %v564 = vsel %vm563, %v556, %v560
        %v565 = vand.u32 2147483647, %v524
        %vm566 = vcmp.eq.f32.partialorder %v565, 8.507059e+37
        %v567 = vand.u32 %v524, 2147483648
        %v568 = vor.u32 1.1754944e-38, %v567
        %v569 = vsel %vm566, %v568, %v564
        %v570 = vmul.f32 1.0, %v569
        %v571 = vrcp.pop %v525
        %v572 = vmul.f32 %v525, %v571
        %v573 = vsub.f32 1.0, %v572
        %v574 = vmul.f32 %v571, %v573
        %v575 = vadd.f32 %v571, %v574
        %vm576 = vweird.f32 %v525
        %vm577 = vweird.f32 %v571
        %vm578 = vmor %vm576, %vm577
        %v579 = vsel %vm578, %v571, %v575
        %v580 = vand.u32 2147483647, %v525
        %vm581 = vcmp.eq.f32.partialorder %v580, 8.507059e+37
        %v582 = vand.u32 %v525, 2147483648
        %v583 = vor.u32 1.1754944e-38, %v582
        %v584 = vsel %vm581, %v583, %v579
        %v585 = vmul.f32 1.0, %v584
        %v586 = vrcp.pop %v526
        %v587 = vmul.f32 %v526, %v586
        %v588 = vsub.f32 1.0, %v587
        %v589 = vmul.f32 %v586, %v588
        %v590 = vadd.f32 %v586, %v589
        %vm591 = vweird.f32 %v526
        %vm592 = vweird.f32 %v586
        %vm593 = vmor %vm591, %vm592
        %v594 = vsel %vm593, %v586, %v590
        %v595 = vand.u32 2147483647, %v526
        %vm596 = vcmp.eq.f32.partialorder %v595, 8.507059e+37
        %v597 = vand.u32 %v526, 2147483648
        %v598 = vor.u32 1.1754944e-38, %v597
        %v599 = vsel %vm596, %v598, %v594
        %v600 = vmul.f32 1.0, %v599
        %v601 = vrcp.pop %v527
        %v602 = vmul.f32 %v527, %v601
        %v603 = vsub.f32 1.0, %v602
        %v604 = vmul.f32 %v601, %v603
        %v605 = vadd.f32 %v601, %v604
        %vm606 = vweird.f32 %v527
        %vm607 = vweird.f32 %v601
        %vm608 = vmor %vm606, %vm607
        %v609 = vsel %vm608, %v601, %v605
        %v610 = vand.u32 2147483647, %v527
        %vm611 = vcmp.eq.f32.partialorder %v610, 8.507059e+37
        %v612 = vand.u32 %v527, 2147483648
        %v613 = vor.u32 1.1754944e-38, %v612
        %v614 = vsel %vm611, %v613, %v609
        %v615 = vmul.f32 1.0, %v614
        %v616 = vrcp.pop %v528
        %v617 = vmul.f32 %v528, %v616
        %v618 = vsub.f32 1.0, %v617
        %v619 = vmul.f32 %v616, %v618
        %v620 = vadd.f32 %v616, %v619
        %vm621 = vweird.f32 %v528
        %vm622 = vweird.f32 %v616
        %vm623 = vmor %vm621, %vm622
        %v624 = vsel %vm623, %v616, %v620
        %v625 = vand.u32 2147483647, %v528
        %vm626 = vcmp.eq.f32.partialorder %v625, 8.507059e+37
        %v627 = vand.u32 %v528, 2147483648
        %v628 = vor.u32 1.1754944e-38, %v627
        %v629 = vsel %vm626, %v628, %v624
        %v630 = vmul.f32 1.0, %v629
        %v631 = vrcp.pop %v529
        %v632 = vmul.f32 %v529, %v631
        %v633 = vsub.f32 1.0, %v632
        %v634 = vmul.f32 %v631, %v633
        %v635 = vadd.f32 %v631, %v634
        %vm636 = vweird.f32 %v529
        %vm637 = vweird.f32 %v631
        %vm638 = vmor %vm636, %vm637
        %v639 = vsel %vm638, %v631, %v635
        %v640 = vand.u32 2147483647, %v529
        %vm641 = vcmp.eq.f32.partialorder %v640, 8.507059e+37
        %v642 = vand.u32 %v529, 2147483648
        %v643 = vor.u32 1.1754944e-38, %v642
        %v644 = vsel %vm641, %v643, %v639
        %v645 = vmul.f32 1.0, %v644
        %v646 = vrcp.pop %v530
        %v647 = vmul.f32 %v530, %v646
        %v648 = vsub.f32 1.0, %v647
        %v649 = vmul.f32 %v646, %v648
        %v650 = vadd.f32 %v646, %v649
        %vm651 = vweird.f32 %v530
        %vm652 = vweird.f32 %v646
        %vm653 = vmor %vm651, %vm652
        %v654 = vsel %vm653, %v646, %v650
        %v655 = vand.u32 2147483647, %v530
        %vm656 = vcmp.eq.f32.partialorder %v655, 8.507059e+37
        %v657 = vand.u32 %v530, 2147483648
        %v658 = vor.u32 1.1754944e-38, %v657
        %v659 = vsel %vm656, %v658, %v654
        %v660 = vmul.f32 1.0, %v659
        %v661 = vrcp.pop %v531
        %v662 = vmul.f32 %v531, %v661
        %v663 = vsub.f32 1.0, %v662
        %v664 = vmul.f32 %v661, %v663
        %v665 = vadd.f32 %v661, %v664
        %vm666 = vweird.f32 %v531
        %vm667 = vweird.f32 %v661
        %vm668 = vmor %vm666, %vm667
        %v669 = vsel %vm668, %v661, %v665
        %v670 = vand.u32 2147483647, %v531
        %vm671 = vcmp.eq.f32.partialorder %v670, 8.507059e+37
        %v672 = vand.u32 %v531, 2147483648
        %v673 = vor.u32 1.1754944e-38, %v672
        %v674 = vsel %vm671, %v673, %v669
        %v675 = vmul.f32 1.0, %v674
        %v676 = vrcp.pop %v532
        %v677 = vmul.f32 %v532, %v676
        %v678 = vsub.f32 1.0, %v677
        %v679 = vmul.f32 %v676, %v678
        %v680 = vadd.f32 %v676, %v679
        %vm681 = vweird.f32 %v532
        %vm682 = vweird.f32 %v676
        %vm683 = vmor %vm681, %vm682
        %v684 = vsel %vm683, %v676, %v680
        %v685 = vand.u32 2147483647, %v532
        %vm686 = vcmp.eq.f32.partialorder %v685, 8.507059e+37
        %v687 = vand.u32 %v532, 2147483648
        %v688 = vor.u32 1.1754944e-38, %v687
        %v689 = vsel %vm686, %v688, %v684
        %v690 = vmul.f32 1.0, %v689
        %v691 = vrcp.pop %v533
        %v692 = vmul.f32 %v533, %v691
        %v693 = vsub.f32 1.0, %v692
        %v694 = vmul.f32 %v691, %v693
        %v695 = vadd.f32 %v691, %v694
        %vm696 = vweird.f32 %v533
        %vm697 = vweird.f32 %v691
        %vm698 = vmor %vm696, %vm697
        %v699 = vsel %vm698, %v691, %v695
        %v700 = vand.u32 2147483647, %v533
        %vm701 = vcmp.eq.f32.partialorder %v700, 8.507059e+37
        %v702 = vand.u32 %v533, 2147483648
        %v703 = vor.u32 1.1754944e-38, %v702
        %v704 = vsel %vm701, %v703, %v699
        %v705 = vmul.f32 1.0, %v704
        %v706 = vrcp.pop %v534
        %v707 = vmul.f32 %v534, %v706
        %v708 = vsub.f32 1.0, %v707
        %v709 = vmul.f32 %v706, %v708
        %v710 = vadd.f32 %v706, %v709
        %vm711 = vweird.f32 %v534
        %vm712 = vweird.f32 %v706
        %vm713 = vmor %vm711, %vm712
        %v714 = vsel %vm713, %v706, %v710
        %v715 = vand.u32 2147483647, %v534
        %vm716 = vcmp.eq.f32.partialorder %v715, 8.507059e+37
        %v717 = vand.u32 %v534, 2147483648
        %v718 = vor.u32 1.1754944e-38, %v717
        %v719 = vsel %vm716, %v718, %v714
        %v720 = vmul.f32 1.0, %v719
        %v721 = vrcp.pop %v535
        %v722 = vmul.f32 %v535, %v721
        %v723 = vsub.f32 1.0, %v722
        %v724 = vmul.f32 %v721, %v723
        %v725 = vadd.f32 %v721, %v724
        %vm726 = vweird.f32 %v535
        %vm727 = vweird.f32 %v721
        %vm728 = vmor %vm726, %vm727
        %v729 = vsel %vm728, %v721, %v725
        %v730 = vand.u32 2147483647, %v535
        %vm731 = vcmp.eq.f32.partialorder %v730, 8.507059e+37
        %v732 = vand.u32 %v535, 2147483648
        %v733 = vor.u32 1.1754944e-38, %v732
        %v734 = vsel %vm731, %v733, %v729
        %v735 = vmul.f32 1.0, %v734
        %v736 = vrcp.pop %v536
        %v737 = vmul.f32 %v536, %v736
        %v738 = vsub.f32 1.0, %v737
        %v739 = vmul.f32 %v736, %v738
        %v740 = vadd.f32 %v736, %v739
        %vm741 = vweird.f32 %v536
        %vm742 = vweird.f32 %v736
        %vm743 = vmor %vm741, %vm742
        %v744 = vsel %vm743, %v736, %v740
        %v745 = vand.u32 2147483647, %v536
        %vm746 = vcmp.eq.f32.partialorder %v745, 8.507059e+37
        %v747 = vand.u32 %v536, 2147483648
        %v748 = vor.u32 1.1754944e-38, %v747
        %v749 = vsel %vm746, %v748, %v744
        %v750 = vmul.f32 1.0, %v749
        %v751 = vrcp.pop %v537
        %v752 = vmul.f32 %v537, %v751
        %v753 = vsub.f32 1.0, %v752
        %v754 = vmul.f32 %v751, %v753
        %v755 = vadd.f32 %v751, %v754
        %vm756 = vweird.f32 %v537
        %vm757 = vweird.f32 %v751
        %vm758 = vmor %vm756, %vm757
        %v759 = vsel %vm758, %v751, %v755
        %v760 = vand.u32 2147483647, %v537
        %vm761 = vcmp.eq.f32.partialorder %v760, 8.507059e+37
        %v762 = vand.u32 %v537, 2147483648
        %v763 = vor.u32 1.1754944e-38, %v762
        %v764 = vsel %vm761, %v763, %v759
        %v765 = vmul.f32 1.0, %v764
        %v766 = vrcp.pop %v538
        %v767 = vmul.f32 %v538, %v766
        %v768 = vsub.f32 1.0, %v767
        %v769 = vmul.f32 %v766, %v768
        %v770 = vadd.f32 %v766, %v769
        %vm771 = vweird.f32 %v538
        %vm772 = vweird.f32 %v766
        %vm773 = vmor %vm771, %vm772
        %v774 = vsel %vm773, %v766, %v770
        %v775 = vand.u32 2147483647, %v538
        %vm776 = vcmp.eq.f32.partialorder %v775, 8.507059e+37
        %v777 = vand.u32 %v538, 2147483648
        %v778 = vor.u32 1.1754944e-38, %v777
        %v779 = vsel %vm776, %v778, %v774
        %v780 = vmul.f32 1.0, %v779
        %v781 = vrcp.pop %v539
        %v782 = vmul.f32 %v539, %v781
        %v783 = vsub.f32 1.0, %v782
        %v784 = vmul.f32 %v781, %v783
        %v785 = vadd.f32 %v781, %v784
        %vm786 = vweird.f32 %v539
        %vm787 = vweird.f32 %v781
        %vm788 = vmor %vm786, %vm787
        %v789 = vsel %vm788, %v781, %v785
        %v790 = vand.u32 2147483647, %v539
        %vm791 = vcmp.eq.f32.partialorder %v790, 8.507059e+37
        %v792 = vand.u32 %v539, 2147483648
        %v793 = vor.u32 1.1754944e-38, %v792
        %v794 = vsel %vm791, %v793, %v789
        %v795 = vmul.f32 1.0, %v794
        %v796 = vrcp.pop %v540
        %v797 = vmul.f32 %v540, %v796
        %v798 = vsub.f32 1.0, %v797
        %v799 = vmul.f32 %v796, %v798
        %v800 = vadd.f32 %v796, %v799
        %vm801 = vweird.f32 %v540
        %vm802 = vweird.f32 %v796
        %vm803 = vmor %vm801, %vm802
        %v804 = vsel %vm803, %v796, %v800
        %v805 = vand.u32 2147483647, %v540
        %vm806 = vcmp.eq.f32.partialorder %v805, 8.507059e+37
        %v807 = vand.u32 %v540, 2147483648
        %v808 = vor.u32 1.1754944e-38, %v807
        %v809 = vsel %vm806, %v808, %v804
        %v810 = vmul.f32 1.0, %v809
        %v811 = vrcp.pop %v541
        %v812 = vmul.f32 %v541, %v811
        %v813 = vsub.f32 1.0, %v812
        %v814 = vmul.f32 %v811, %v813
        %v815 = vadd.f32 %v811, %v814
        %vm816 = vweird.f32 %v541
        %vm817 = vweird.f32 %v811
        %vm818 = vmor %vm816, %vm817
        %v819 = vsel %vm818, %v811, %v815
        %v820 = vand.u32 2147483647, %v541
        %vm821 = vcmp.eq.f32.partialorder %v820, 8.507059e+37
        %v822 = vand.u32 %v541, 2147483648
        %v823 = vor.u32 1.1754944e-38, %v822
        %v824 = vsel %vm821, %v823, %v819
        %v825 = vmul.f32 1.0, %v824
        %v826 = vrcp.pop %v542
        %v827 = vmul.f32 %v542, %v826
        %v828 = vsub.f32 1.0, %v827
        %v829 = vmul.f32 %v826, %v828
        %v830 = vadd.f32 %v826, %v829
        %vm831 = vweird.f32 %v542
        %vm832 = vweird.f32 %v826
        %vm833 = vmor %vm831, %vm832
        %v834 = vsel %vm833, %v826, %v830
        %v835 = vand.u32 2147483647, %v542
        %vm836 = vcmp.eq.f32.partialorder %v835, 8.507059e+37
        %v837 = vand.u32 %v542, 2147483648
        %v838 = vor.u32 1.1754944e-38, %v837
        %v839 = vsel %vm836, %v838, %v834
        %v840 = vmul.f32 1.0, %v839
        %v841 = vrcp.pop %v543
        %v842 = vmul.f32 %v543, %v841
        %v843 = vsub.f32 1.0, %v842
        %v844 = vmul.f32 %v841, %v843
        %v845 = vadd.f32 %v841, %v844
        %vm846 = vweird.f32 %v543
        %vm847 = vweird.f32 %v841
        %vm848 = vmor %vm846, %vm847
        %v849 = vsel %vm848, %v841, %v845
        %v850 = vand.u32 2147483647, %v543
        %vm851 = vcmp.eq.f32.partialorder %v850, 8.507059e+37
        %v852 = vand.u32 %v543, 2147483648
        %v853 = vor.u32 1.1754944e-38, %v852
        %v854 = vsel %vm851, %v853, %v849
        %v855 = vmul.f32 1.0, %v854
        %v856 = vrcp.pop %v544
        %v857 = vmul.f32 %v544, %v856
        %v858 = vsub.f32 1.0, %v857
        %v859 = vmul.f32 %v856, %v858
        %v860 = vadd.f32 %v856, %v859
        %vm861 = vweird.f32 %v544
        %vm862 = vweird.f32 %v856
        %vm863 = vmor %vm861, %vm862
        %v864 = vsel %vm863, %v856, %v860
        %v865 = vand.u32 2147483647, %v544
        %vm866 = vcmp.eq.f32.partialorder %v865, 8.507059e+37
        %v867 = vand.u32 %v544, 2147483648
        %v868 = vor.u32 1.1754944e-38, %v867
        %v869 = vsel %vm866, %v868, %v864
        %v870 = vmul.f32 1.0, %v869
        %v871 = vrcp.pop %v545
        %v872 = vmul.f32 %v545, %v871
        %v873 = vsub.f32 1.0, %v872
        %v874 = vmul.f32 %v871, %v873
        %v875 = vadd.f32 %v871, %v874
        %vm876 = vweird.f32 %v545
        %vm877 = vweird.f32 %v871
        %vm878 = vmor %vm876, %vm877
        %v879 = vsel %vm878, %v871, %v875
        %v880 = vand.u32 2147483647, %v545
        %vm881 = vcmp.eq.f32.partialorder %v880, 8.507059e+37
        %v882 = vand.u32 %v545, 2147483648
        %v883 = vor.u32 1.1754944e-38, %v882
        %v884 = vsel %vm881, %v883, %v879
        %v885 = vmul.f32 1.0, %v884
        %v886 = vrcp.pop %v546
        %v887 = vmul.f32 %v546, %v886
        %v888 = vsub.f32 1.0, %v887
        %v889 = vmul.f32 %v886, %v888
        %v890 = vadd.f32 %v886, %v889
        %vm891 = vweird.f32 %v546
        %vm892 = vweird.f32 %v886
        %vm893 = vmor %vm891, %vm892
        %v894 = vsel %vm893, %v886, %v890
        %v895 = vand.u32 2147483647, %v546
        %vm896 = vcmp.eq.f32.partialorder %v895, 8.507059e+37
        %v897 = vand.u32 %v546, 2147483648
        %v898 = vor.u32 1.1754944e-38, %v897
        %v899 = vsel %vm896, %v898, %v894
        %v900 = vmul.f32 1.0, %v899
        %v901 = vrcp.pop %v547
        %v902 = vmul.f32 %v547, %v901
        %v903 = vsub.f32 1.0, %v902
        %v904 = vmul.f32 %v901, %v903
        %v905 = vadd.f32 %v901, %v904
        %vm906 = vweird.f32 %v547
        %vm907 = vweird.f32 %v901
        %vm908 = vmor %vm906, %vm907
        %v909 = vsel %vm908, %v901, %v905
        %v910 = vand.u32 2147483647, %v547
        %vm911 = vcmp.eq.f32.partialorder %v910, 8.507059e+37
        %v912 = vand.u32 %v547, 2147483648
        %v913 = vor.u32 1.1754944e-38, %v912
        %v914 = vsel %vm911, %v913, %v909
        %v915 = vmul.f32 1.0, %v914
        %v916 = vrcp.pop %v548
        %v917 = vmul.f32 %v548, %v916
        %v918 = vsub.f32 1.0, %v917
        %v919 = vmul.f32 %v916, %v918
        %v920 = vadd.f32 %v916, %v919
        %vm921 = vweird.f32 %v548
        %vm922 = vweird.f32 %v916
        %vm923 = vmor %vm921, %vm922
        %v924 = vsel %vm923, %v916, %v920
        %v925 = vand.u32 2147483647, %v548
        %vm926 = vcmp.eq.f32.partialorder %v925, 8.507059e+37
        %v927 = vand.u32 %v548, 2147483648
        %v928 = vor.u32 1.1754944e-38, %v927
        %v929 = vsel %vm926, %v928, %v924
        %v930 = vmul.f32 1.0, %v929
        %v931 = vrcp.pop %v549
        %v932 = vmul.f32 %v549, %v931
        %v933 = vsub.f32 1.0, %v932
        %v934 = vmul.f32 %v931, %v933
        %v935 = vadd.f32 %v931, %v934
        %vm936 = vweird.f32 %v549
        %vm937 = vweird.f32 %v931
        %vm938 = vmor %vm936, %vm937
        %v939 = vsel %vm938, %v931, %v935
        %v940 = vand.u32 2147483647, %v549
        %vm941 = vcmp.eq.f32.partialorder %v940, 8.507059e+37
        %v942 = vand.u32 %v549, 2147483648
        %v943 = vor.u32 1.1754944e-38, %v942
        %v944 = vsel %vm941, %v943, %v939
        %v945 = vmul.f32 1.0, %v944
        %v946 = vrcp.pop %v550
        %v947 = vmul.f32 %v550, %v946
        %v948 = vsub.f32 1.0, %v947
        %v949 = vmul.f32 %v946, %v948
        %v950 = vadd.f32 %v946, %v949
        %vm951 = vweird.f32 %v550
        %vm952 = vweird.f32 %v946
        %vm953 = vmor %vm951, %vm952
        %v954 = vsel %vm953, %v946, %v950
        %v955 = vand.u32 2147483647, %v550
        %vm956 = vcmp.eq.f32.partialorder %v955, 8.507059e+37
        %v957 = vand.u32 %v550, 2147483648
        %v958 = vor.u32 1.1754944e-38, %v957
        %v959 = vsel %vm956, %v958, %v954
        %v960 = vmul.f32 1.0, %v959
        %v961 = vrcp.pop %v551
        %v962 = vmul.f32 %v551, %v961
        %v963 = vsub.f32 1.0, %v962
        %v964 = vmul.f32 %v961, %v963
        %v965 = vadd.f32 %v961, %v964
        %vm966 = vweird.f32 %v551
        %vm967 = vweird.f32 %v961
        %vm968 = vmor %vm966, %vm967
        %v969 = vsel %vm968, %v961, %v965
        %v970 = vand.u32 2147483647, %v551
        %vm971 = vcmp.eq.f32.partialorder %v970, 8.507059e+37
        %v972 = vand.u32 %v551, 2147483648
        %v973 = vor.u32 1.1754944e-38, %v972
        %v974 = vsel %vm971, %v973, %v969
        %v975 = vmul.f32 1.0, %v974
        %v976 = vrcp.pop %v552
        %v977 = vmul.f32 %v552, %v976
        %v978 = vsub.f32 1.0, %v977
        %v979 = vmul.f32 %v976, %v978
        %v980 = vadd.f32 %v976, %v979
        %vm981 = vweird.f32 %v552
        %vm982 = vweird.f32 %v976
        %vm983 = vmor %vm981, %vm982
        %v984 = vsel %vm983, %v976, %v980
        %v985 = vand.u32 2147483647, %v552
        %vm986 = vcmp.eq.f32.partialorder %v985, 8.507059e+37
        %v987 = vand.u32 %v552, 2147483648
        %v988 = vor.u32 1.1754944e-38, %v987
        %v989 = vsel %vm986, %v988, %v984
        %v990 = vmul.f32 1.0, %v989
        %v991 = vrcp.pop %v553
        %v992 = vmul.f32 %v553, %v991
        %v993 = vsub.f32 1.0, %v992
        %v994 = vmul.f32 %v991, %v993
        %v995 = vadd.f32 %v991, %v994
        %vm996 = vweird.f32 %v553
        %vm997 = vweird.f32 %v991
        %vm998 = vmor %vm996, %vm997
        %v999 = vsel %vm998, %v991, %v995
        %v1000 = vand.u32 2147483647, %v553
        %vm1001 = vcmp.eq.f32.partialorder %v1000, 8.507059e+37
        %v1002 = vand.u32 %v553, 2147483648
        %v1003 = vor.u32 1.1754944e-38, %v1002
        %v1004 = vsel %vm1001, %v1003, %v999
        %v1005 = vmul.f32 1.0, %v1004
        %v1006 = vrcp.pop %v554
        %v1007 = vmul.f32 %v554, %v1006
        %v1008 = vsub.f32 1.0, %v1007
        %v1009 = vmul.f32 %v1006, %v1008
        %v1010 = vadd.f32 %v1006, %v1009
        %vm1011 = vweird.f32 %v554
        %vm1012 = vweird.f32 %v1006
        %vm1013 = vmor %vm1011, %vm1012
        %v1014 = vsel %vm1013, %v1006, %v1010
        %v1015 = vand.u32 2147483647, %v554
        %vm1016 = vcmp.eq.f32.partialorder %v1015, 8.507059e+37
        %v1017 = vand.u32 %v554, 2147483648
        %v1018 = vor.u32 1.1754944e-38, %v1017
        %v1019 = vsel %vm1016, %v1018, %v1014
        %v1020 = vmul.f32 1.0, %v1019
        %v1021 = vrcp.pop %v555
        %v1022 = vmul.f32 %v555, %v1021
        %v1023 = vsub.f32 1.0, %v1022
        %v1024 = vmul.f32 %v1021, %v1023
        %v1025 = vadd.f32 %v1021, %v1024
        %vm1026 = vweird.f32 %v555
        %vm1027 = vweird.f32 %v1021
        %vm1028 = vmor %vm1026, %vm1027
        %v1029 = vsel %vm1028, %v1021, %v1025
        %v1030 = vand.u32 2147483647, %v555
        %vm1031 = vcmp.eq.f32.partialorder %v1030, 8.507059e+37
        %v1032 = vand.u32 %v555, 2147483648
        %v1033 = vor.u32 1.1754944e-38, %v1032
        %v1034 = vsel %vm1031, %v1033, %v1029
        %v1035 = vmul.f32 1.0, %v1034
        %v1036 = vmul.f32 %v349, %v570
        %v1037 = vmul.f32 %v351, %v585
        %v1038 = vmul.f32 %v354, %v600
        %v1039 = vmul.f32 %v356, %v615
        %v1040 = vmul.f32 %v359, %v630
        %v1041 = vmul.f32 %v361, %v645
        %v1042 = vmul.f32 %v364, %v660
        %v1043 = vmul.f32 %v366, %v675
        %v1044 = vmul.f32 %v369, %v690
        %v1045 = vmul.f32 %v371, %v705
        %v1046 = vmul.f32 %v374, %v720
        %v1047 = vmul.f32 %v376, %v735
        %v1048 = vmul.f32 %v379, %v750
        %v1049 = vmul.f32 %v381, %v765
        %v1050 = vmul.f32 %v384, %v780
        %v1051 = vmul.f32 %v386, %v795
        %v1052 = vmul.f32 %v389, %v810
        %v1053 = vmul.f32 %v391, %v825
        %v1054 = vmul.f32 %v394, %v840
        %v1055 = vmul.f32 %v396, %v855
        %v1056 = vmul.f32 %v399, %v870
        %v1057 = vmul.f32 %v401, %v885
        %v1058 = vmul.f32 %v404, %v900
        %v1059 = vmul.f32 %v406, %v915
        %v1060 = vmul.f32 %v409, %v930
        %v1061 = vmul.f32 %v411, %v945
        %v1062 = vmul.f32 %v414, %v960
        %v1063 = vmul.f32 %v416, %v975
        %v1064 = vmul.f32 %v419, %v990
        %v1065 = vmul.f32 %v421, %v1005
        %v1066 = vmul.f32 %v424, %v1020
        %v1067 = vmul.f32 %v426, %v1035
        %vm1068 = vcmask 261120
        %v1069 = vsel %vm1068, %v1036, 0.0
        %v1070 = vsel %vm1068, %v1037, 0.0
        %v1071 = vadd.f32 %v1069, %v1070
        %v1072 = vsel %vm1068, %v1038, 0.0
        %v1073 = vadd.f32 %v1071, %v1072
        %v1074 = vsel %vm1068, %v1039, 0.0
        %v1075 = vadd.f32 %v1073, %v1074
        %v1076 = vsel %vm1068, %v1040, 0.0
        %v1077 = vadd.f32 %v1075, %v1076
        %v1078 = vsel %vm1068, %v1041, 0.0
        %v1079 = vadd.f32 %v1077, %v1078
        %v1080 = vsel %vm1068, %v1042, 0.0
        %v1081 = vadd.f32 %v1079, %v1080
        %v1082 = vsel %vm1068, %v1043, 0.0
        %v1083 = vadd.f32 %v1081, %v1082
        %v1084 = vsel %vm1068, %v1044, 0.0
        %v1085 = vadd.f32 %v1083, %v1084
        %v1086 = vsel %vm1068, %v1045, 0.0
        %v1087 = vadd.f32 %v1085, %v1086
        %v1088 = vsel %vm1068, %v1046, 0.0
        %v1089 = vadd.f32 %v1087, %v1088
        %v1090 = vsel %vm1068, %v1047, 0.0
        %v1091 = vadd.f32 %v1089, %v1090
        %v1092 = vsel %vm1068, %v1048, 0.0
        %v1093 = vadd.f32 %v1091, %v1092
        %v1094 = vsel %vm1068, %v1049, 0.0
        %v1095 = vadd.f32 %v1093, %v1094
        %v1096 = vsel %vm1068, %v1050, 0.0
        %v1097 = vadd.f32 %v1095, %v1096
        %v1098 = vsel %vm1068, %v1051, 0.0
        %v1099 = vadd.f32 %v1097, %v1098
        %v1100 = vsel %vm1068, %v1052, 0.0
        %v1101 = vadd.f32 %v1099, %v1100
        %v1102 = vsel %vm1068, %v1053, 0.0
        %v1103 = vadd.f32 %v1101, %v1102
        %v1104 = vsel %vm1068, %v1054, 0.0
        %v1105 = vadd.f32 %v1103, %v1104
        %v1106 = vsel %vm1068, %v1055, 0.0
        %v1107 = vadd.f32 %v1105, %v1106
        %v1108 = vsel %vm1068, %v1056, 0.0
        %v1109 = vadd.f32 %v1107, %v1108
        %v1110 = vsel %vm1068, %v1057, 0.0
        %v1111 = vadd.f32 %v1109, %v1110
        %v1112 = vsel %vm1068, %v1058, 0.0
        %v1113 = vadd.f32 %v1111, %v1112
        %v1114 = vsel %vm1068, %v1059, 0.0
        %v1115 = vadd.f32 %v1113, %v1114
        %v1116 = vsel %vm1068, %v1060, 0.0
        %v1117 = vadd.f32 %v1115, %v1116
        %v1118 = vsel %vm1068, %v1061, 0.0
        %v1119 = vadd.f32 %v1117, %v1118
        %v1120 = vsel %vm1068, %v1062, 0.0
        %v1121 = vadd.f32 %v1119, %v1120
        %v1122 = vsel %vm1068, %v1063, 0.0
        %v1123 = vadd.f32 %v1121, %v1122
        %v1124 = vsel %vm1068, %v1064, 0.0
        %v1125 = vadd.f32 %v1123, %v1124
        %v1126 = vsel %vm1068, %v1065, 0.0
        %v1127 = vadd.f32 %v1125, %v1126
        %v1128 = vsel %vm1068, %v1066, 0.0
        %v1129 = vadd.f32 %v1127, %v1128
        %v1130 = vsel %vm1068, %v1067, 0.0
        %v1131 = vadd.f32 %v1129, %v1130
        %v1132 = vrot.slane %v1131, 4
        %v1133 = vadd.f32 %v1131, %v1132
        %v1134 = vrot.slane %v1133, 2
        %v1135 = vadd.f32 %v1133, %v1134
        %v1136 = vrot.slane %v1135, 1
        %v1137 = vadd.f32 %v1135, %v1136
        %v1138 = vmul.f32 %v1137, 0.00390625
        %vm1139 = vcmask 253952
        %1140 = vst.msk [vmem:[%s162] sm:$0x1] %vm1139, %v1138
        %s1141 = sand.u32 %s93, 1
        %s1142 = scalar_lea.sflag [#allocation3], %s1141
        %s1143 = sand.u32 %s93, 1
        %s1144 = scalar_lea.vmem [#allocation2], %s1143
        // Predicated region
        $region33: #{tpu_custom_call.1} parent=31 // pred_check
          %p1145 = pneg %p103
        $region34: #{tpu_custom_call.1} parent=31 // pred_check_branch
          %1147 = sbr.rel (%p1145) target = $region36
        $region35: #{tpu_custom_call.1} parent=31 // pred_region
          %1149 = vsyncadd %s1142, 0
          %s1150 = scalar_lea.hbm %s3, %s17
          %s1152 = sshll.u32 %s1144, 4
          %s1153 = int_to_ptr.vmem [resolvable:$true] %s1152
          %s1154 = sshll.u32 %s1150, 4
          %s1155 = int_to_ptr.hbm [resolvable:$true] %s1154
          %1157 = dma.vmem_to_hbm [thread:$0]  %s1153, 16, %s1155, %s1142
        $region36: #{tpu_custom_call.1} parent=31 // pred_fallthru
          _
      $region32: #{tpu_custom_call.1} parent=5 // pred_fallthru
        _
      %p1158 = scmp.le.s32.totalorder 2, %s12
      // Predicated region
      $region37: #{tpu_custom_call.1} parent=5 // pred_check
        %p1159 = pneg %p1158
      $region38: #{tpu_custom_call.1} parent=5 // pred_check_branch
        %1161 = sbr.rel (%p1159) target = $region40
      $region39: #{tpu_custom_call.1} parent=5 // pred_region
        %s1162 = ssub.s32 %s12, 2
        // Predicated region
        $region41: #{tpu_custom_call.1} parent=39 // pred_check
          %p1163 = pneg %p109
        $region42: #{tpu_custom_call.1} parent=39 // pred_check_branch
          %1165 = sbr.rel (%p1163) target = $region44
        $region43: #{tpu_custom_call.1} parent=39 // pred_region
          %s1166 = sand.u32 %s94, 1
          %s1167 = scalar_lea.sflag [#allocation3], %s1166
          %s1168 = sand.u32 %s94, 1
          %s1169 = scalar_lea.vmem [#allocation2], %s1168
          %1171 = dma.done %s1167, 16
        $region44: #{tpu_custom_call.1} parent=39 // pred_fallthru
          _
      $region40: #{tpu_custom_call.1} parent=5 // pred_fallthru
        _
    $region6: #{tpu_custom_call.1} parent=1 // loop_footer
      %s16 = sadd.s32 1, %s12
    $region7: #{tpu_custom_call.1} parent=1 // loop_footer_branch
      %11 = sbr.rel target = $region3
    $region8: #{tpu_custom_call.1} parent=1 // loop_exit
      _
    %1172 = vsyncpa [#allocation3], 1
    %s1173 = scalar_lea.sflag [#allocation3], 1
    %1174 = vsyncpa %s1173, 1

</llo_original>
